<compile_context>
chip_gen: v6e
topology: v6e:2x2x1
jax: 0.10.0
libtpu: 0.0.40
codegen_flags: <defaults>
</compile_context>

<pallas_src>
import functools

import jax
import jax.numpy as jnp
from jax.experimental import pallas as pl
from jax.experimental.pallas import tpu as pltpu

D_IN, HIDDEN, D_OUT = 2, 10, 2
LANE = 128                 # TPU lane width
MAX_TILE_BATCH = 64 * 1024  # batch elements per grid step (~1 MiB in+out / step)
MIN_PALLAS_BATCH = 2048     # below this, plain XLA wins (dispatch/layout dominate)


def _round_up(a, m):
    return ((a + m - 1) // m) * m


def mlp_kernel(w1_ref, b1_ref, w2_ref, b2_ref, x_ref, o_ref):
    """Fused fc2(relu(fc1(x))) on one batch tile.

    w1: (10, 2), b1: (10,), w2: (2, 10), b2: (2,)   -- SMEM, scalar reads
    x : (D_IN,  sb, 128)  batch on sublanes x lanes -- VMEM
    o : (D_OUT, sb, 128)                            -- VMEM
    """
    x0 = x_ref[0, :, :]          # (sb, 128), fully packed vregs
    x1 = x_ref[1, :, :]

    # Output accumulators start at the fc2 bias.
    y0 = jnp.full(x0.shape, b2_ref[0], dtype=jnp.float32)
    y1 = jnp.full(x0.shape, b2_ref[1], dtype=jnp.float32)

    # Row-stream the hidden layer: each h_j is one (sb,128) tile, folded into
    # y0/y1 immediately; only ~3 tiles of the batch stay live at any time.
    for j in range(HIDDEN):      # static unroll, 10 hidden units
        hj = jnp.maximum(w1_ref[j, 0] * x0 + w1_ref[j, 1] * x1 + b1_ref[j], 0.0)
        y0 = y0 + w2_ref[0, j] * hj
        y1 = y1 + w2_ref[1, j] * hj

    o_ref[0, :, :] = y0.astype(o_ref.dtype)
    o_ref[1, :, :] = y1.astype(o_ref.dtype)


def _net2_pallas(x, w1, b1, w2, b2, tile_batch):
    """Pallas path.  x: (B, 2) f32  ->  (B, 2) f32."""
    B = x.shape[0]

    # ---- tiling: batch laid out as (S, 128) = (sublane rows, lanes) --------
    S = _round_up(B, LANE) // LANE            # number of 128-wide batch chunks
    sb_max = max(8, tile_batch // LANE)       # sublane rows per grid step
    steps = max(2, pl.cdiv(S, sb_max))        # >=2 steps so both v7x TCs work
    sb = _round_up(pl.cdiv(S, steps), 8)      # rows per step (multiple of 8)
    Sp = sb * steps                           # padded row count (<2% waste)
    bp = Sp * LANE

    # Feature-major, lane-dense layout (D_IN, Sp, 128).  Transpose + pad is a
    # single fused wrapper pass; feature-major producers can skip it.
    xt = jnp.zeros((D_IN, bp), jnp.float32).at[:, :B].set(x.T.astype(jnp.float32))
    xt = xt.reshape(D_IN, Sp, LANE)

    out = pl.pallas_call(
        mlp_kernel,
        out_shape=jax.ShapeDtypeStruct((D_OUT, Sp, LANE), jnp.float32),
        grid=(steps,),
        in_specs=[
            pl.BlockSpec(memory_space=pltpu.MemorySpace.SMEM),   # w1 (10, 2)
            pl.BlockSpec(memory_space=pltpu.MemorySpace.SMEM),   # b1 (10,)
            pl.BlockSpec(memory_space=pltpu.MemorySpace.SMEM),   # w2 (2, 10)
            pl.BlockSpec(memory_space=pltpu.MemorySpace.SMEM),   # b2 (2,)
            pl.BlockSpec((D_IN, sb, LANE), lambda i: (0, i, 0)),  # batch tile
        ],
        out_specs=pl.BlockSpec((D_OUT, sb, LANE), lambda i: (0, i, 0)),
        compiler_params=pltpu.CompilerParams(
            dimension_semantics=("parallel",)),   # shard tiles across TCs (v7x)
    )(w1, b1, w2, b2, xt)

    return out.reshape(D_OUT, bp)[:, :B].T        # back to (B, 2)


@functools.partial(jax.jit, static_argnames=("tile_batch", "min_pallas_batch"))
def net2_forward(x, w1, b1, w2, b2, *, tile_batch=MAX_TILE_BATCH,
                 min_pallas_batch=MIN_PALLAS_BATCH):
    """Net2 forward pass: fc2(relu(fc1(x))), PyTorch nn.Linear semantics.

    x : (B, 2) float32
    w1: (10, 2), b1: (10,), w2: (2, 10), b2: (2,)  (torch (out, in) layout)
    Returns (B, 2) float32.
    """
    B = x.shape[0]
    if B < min_pallas_batch:
        # Tiny batches: pallas_call dispatch + layout change dominate; a fused
        # XLA matmul/elementwise chain is strictly faster here.
        return jnp.maximum(x @ w1.T + b1, 0.0) @ w2.T + b2
    return _net2_pallas(x, w1, b1, w2, b2, tile_batch)


def init_params(key):
    """Deterministic init with nn.Linear (out, in) weight layout."""
    k1, k2, k3, k4 = jax.random.split(key, 4)
    w1 = jax.random.uniform(k1, (HIDDEN, D_IN), jnp.float32, -0.5, 0.5)
    b1 = jax.random.uniform(k2, (HIDDEN,), jnp.float32, -0.5, 0.5)
    w2 = jax.random.uniform(k3, (D_OUT, HIDDEN), jnp.float32, -0.3, 0.3)
    b2 = jax.random.uniform(k4, (D_OUT,), jnp.float32, -0.3, 0.3)
    return w1, b1, w2, b2


if __name__ == "__main__":
    key = jax.random.PRNGKey(0)
    kx1, kx2, kp = jax.random.split(key, 3)
    w1, b1, w2, b2 = init_params(kp)

    def ref(v):
        return jnp.maximum(v @ w1.T + b1, 0.0) @ w2.T + b2

    # Pallas path: batch large enough to hit the kernel, deliberately awkward
    # (not a multiple of 128 or of the tile) to exercise the padding logic.
    B = 4999
    x = jax.random.normal(kx1, (B, D_IN), jnp.float32)
    out = jax.block_until_ready(net2_forward(x, w1, b1, w2, b2))
    assert out.shape == (B, D_OUT)
    assert jnp.allclose(out, ref(x), atol=1e-4), "pallas path mismatch vs reference"

    # Small-batch fallback path (plain XLA).
    xs = jax.random.normal(kx2, (8, D_IN), jnp.float32)
    outs = jax.block_until_ready(net2_forward(xs, w1, b1, w2, b2))
    assert outs.shape == (8, D_OUT)
    assert jnp.allclose(outs, ref(xs), atol=1e-4), "fallback path mismatch vs reference"

    print("KERNEL_OK")
</pallas_src>

<mosaic_0001>
module attributes {stable_mosaic.version = 11 : i64} {
  func.func @mlp_kernel(%arg0: i32, %arg1: memref<10x2xf32, #tpu.memory_space<smem>>, %arg2: memref<10xf32, #tpu.memory_space<smem>>, %arg3: memref<2x10xf32, #tpu.memory_space<smem>>, %arg4: memref<2xf32, #tpu.memory_space<smem>>, %arg5: memref<2x24x128xf32, #tpu.memory_space<vmem>>, %arg6: memref<2x24x128xf32, #tpu.memory_space<vmem>>) attributes {dimension_semantics = [#tpu.dimension_semantics<parallel>], iteration_bounds = array<i64: 2>, scalar_prefetch = 0 : i64, scratch_operands = 0 : i64, tpu.core_type = #tpu.core_type<tc>, window_params = [{transform_indices = @transform_0, window_bounds = array<i64: 10, 2>}, {transform_indices = @transform_1, window_bounds = array<i64: 10>}, {transform_indices = @transform_2, window_bounds = array<i64: 2, 10>}, {transform_indices = @transform_3, window_bounds = array<i64: 2>}, {transform_indices = @transform_4, window_bounds = array<i64: 2, 24, 128>}, {transform_indices = @transform_5, window_bounds = array<i64: 2, 24, 128>}]} {
    %c0 = arith.constant 0 : index
    %c0_0 = arith.constant 0 : index
    %c0_1 = arith.constant 0 : index
    %0 = vector.load %arg5[%c0, %c0_0, %c0_1] : memref<2x24x128xf32, #tpu.memory_space<vmem>>, vector<1x24x128xf32>
    %1 = vector.shape_cast %0 : vector<1x24x128xf32> to vector<24x128xf32>
    %c1 = arith.constant 1 : index
    %c0_2 = arith.constant 0 : index
    %c0_3 = arith.constant 0 : index
    %2 = vector.load %arg5[%c1, %c0_2, %c0_3] : memref<2x24x128xf32, #tpu.memory_space<vmem>>, vector<1x24x128xf32>
    %3 = vector.shape_cast %2 : vector<1x24x128xf32> to vector<24x128xf32>
    %c0_4 = arith.constant 0 : index
    %4 = memref.load %arg4[%c0_4] : memref<2xf32, #tpu.memory_space<smem>>
    %5 = vector.broadcast %4 : f32 to vector<24x128xf32>
    %c1_5 = arith.constant 1 : index
    %6 = memref.load %arg4[%c1_5] : memref<2xf32, #tpu.memory_space<smem>>
    %7 = vector.broadcast %6 : f32 to vector<24x128xf32>
    %c0_6 = arith.constant 0 : index
    %c0_7 = arith.constant 0 : index
    %8 = memref.load %arg1[%c0_6, %c0_7] : memref<10x2xf32, #tpu.memory_space<smem>>
    %9 = vector.broadcast %8 : f32 to vector<24x128xf32>
    %10 = arith.mulf %9, %1 : vector<24x128xf32>
    %c0_8 = arith.constant 0 : index
    %c1_9 = arith.constant 1 : index
    %11 = memref.load %arg1[%c0_8, %c1_9] : memref<10x2xf32, #tpu.memory_space<smem>>
    %12 = vector.broadcast %11 : f32 to vector<24x128xf32>
    %13 = arith.mulf %12, %3 : vector<24x128xf32>
    %14 = arith.addf %10, %13 : vector<24x128xf32>
    %c0_10 = arith.constant 0 : index
    %15 = memref.load %arg2[%c0_10] : memref<10xf32, #tpu.memory_space<smem>>
    %16 = vector.broadcast %15 : f32 to vector<24x128xf32>
    %17 = arith.addf %14, %16 : vector<24x128xf32>
    %cst = arith.constant 0.000000e+00 : f32
    %18 = vector.broadcast %cst : f32 to vector<24x128xf32>
    %19 = arith.maximumf %17, %18 : vector<24x128xf32>
    %c0_11 = arith.constant 0 : index
    %c0_12 = arith.constant 0 : index
    %20 = memref.load %arg3[%c0_11, %c0_12] : memref<2x10xf32, #tpu.memory_space<smem>>
    %21 = vector.broadcast %20 : f32 to vector<24x128xf32>
    %22 = arith.mulf %21, %19 : vector<24x128xf32>
    %23 = arith.addf %5, %22 : vector<24x128xf32>
    %c1_13 = arith.constant 1 : index
    %c0_14 = arith.constant 0 : index
    %24 = memref.load %arg3[%c1_13, %c0_14] : memref<2x10xf32, #tpu.memory_space<smem>>
    %25 = vector.broadcast %24 : f32 to vector<24x128xf32>
    %26 = arith.mulf %25, %19 : vector<24x128xf32>
    %27 = arith.addf %7, %26 : vector<24x128xf32>
    %c1_15 = arith.constant 1 : index
    %c0_16 = arith.constant 0 : index
    %28 = memref.load %arg1[%c1_15, %c0_16] : memref<10x2xf32, #tpu.memory_space<smem>>
    %29 = vector.broadcast %28 : f32 to vector<24x128xf32>
    %30 = arith.mulf %29, %1 : vector<24x128xf32>
    %c1_17 = arith.constant 1 : index
    %c1_18 = arith.constant 1 : index
    %31 = memref.load %arg1[%c1_17, %c1_18] : memref<10x2xf32, #tpu.memory_space<smem>>
    %32 = vector.broadcast %31 : f32 to vector<24x128xf32>
    %33 = arith.mulf %32, %3 : vector<24x128xf32>
    %34 = arith.addf %30, %33 : vector<24x128xf32>
    %c1_19 = arith.constant 1 : index
    %35 = memref.load %arg2[%c1_19] : memref<10xf32, #tpu.memory_space<smem>>
    %36 = vector.broadcast %35 : f32 to vector<24x128xf32>
    %37 = arith.addf %34, %36 : vector<24x128xf32>
    %cst_20 = arith.constant 0.000000e+00 : f32
    %38 = vector.broadcast %cst_20 : f32 to vector<24x128xf32>
    %39 = arith.maximumf %37, %38 : vector<24x128xf32>
    %c0_21 = arith.constant 0 : index
    %c1_22 = arith.constant 1 : index
    %40 = memref.load %arg3[%c0_21, %c1_22] : memref<2x10xf32, #tpu.memory_space<smem>>
    %41 = vector.broadcast %40 : f32 to vector<24x128xf32>
    %42 = arith.mulf %41, %39 : vector<24x128xf32>
    %43 = arith.addf %23, %42 : vector<24x128xf32>
    %c1_23 = arith.constant 1 : index
    %c1_24 = arith.constant 1 : index
    %44 = memref.load %arg3[%c1_23, %c1_24] : memref<2x10xf32, #tpu.memory_space<smem>>
    %45 = vector.broadcast %44 : f32 to vector<24x128xf32>
    %46 = arith.mulf %45, %39 : vector<24x128xf32>
    %47 = arith.addf %27, %46 : vector<24x128xf32>
    %c2 = arith.constant 2 : index
    %c0_25 = arith.constant 0 : index
    %48 = memref.load %arg1[%c2, %c0_25] : memref<10x2xf32, #tpu.memory_space<smem>>
    %49 = vector.broadcast %48 : f32 to vector<24x128xf32>
    %50 = arith.mulf %49, %1 : vector<24x128xf32>
    %c2_26 = arith.constant 2 : index
    %c1_27 = arith.constant 1 : index
    %51 = memref.load %arg1[%c2_26, %c1_27] : memref<10x2xf32, #tpu.memory_space<smem>>
    %52 = vector.broadcast %51 : f32 to vector<24x128xf32>
    %53 = arith.mulf %52, %3 : vector<24x128xf32>
    %54 = arith.addf %50, %53 : vector<24x128xf32>
    %c2_28 = arith.constant 2 : index
    %55 = memref.load %arg2[%c2_28] : memref<10xf32, #tpu.memory_space<smem>>
    %56 = vector.broadcast %55 : f32 to vector<24x128xf32>
    %57 = arith.addf %54, %56 : vector<24x128xf32>
    %cst_29 = arith.constant 0.000000e+00 : f32
    %58 = vector.broadcast %cst_29 : f32 to vector<24x128xf32>
    %59 = arith.maximumf %57, %58 : vector<24x128xf32>
    %c0_30 = arith.constant 0 : index
    %c2_31 = arith.constant 2 : index
    %60 = memref.load %arg3[%c0_30, %c2_31] : memref<2x10xf32, #tpu.memory_space<smem>>
    %61 = vector.broadcast %60 : f32 to vector<24x128xf32>
    %62 = arith.mulf %61, %59 : vector<24x128xf32>
    %63 = arith.addf %43, %62 : vector<24x128xf32>
    %c1_32 = arith.constant 1 : index
    %c2_33 = arith.constant 2 : index
    %64 = memref.load %arg3[%c1_32, %c2_33] : memref<2x10xf32, #tpu.memory_space<smem>>
    %65 = vector.broadcast %64 : f32 to vector<24x128xf32>
    %66 = arith.mulf %65, %59 : vector<24x128xf32>
    %67 = arith.addf %47, %66 : vector<24x128xf32>
    %c3 = arith.constant 3 : index
    %c0_34 = arith.constant 0 : index
    %68 = memref.load %arg1[%c3, %c0_34] : memref<10x2xf32, #tpu.memory_space<smem>>
    %69 = vector.broadcast %68 : f32 to vector<24x128xf32>
    %70 = arith.mulf %69, %1 : vector<24x128xf32>
    %c3_35 = arith.constant 3 : index
    %c1_36 = arith.constant 1 : index
    %71 = memref.load %arg1[%c3_35, %c1_36] : memref<10x2xf32, #tpu.memory_space<smem>>
    %72 = vector.broadcast %71 : f32 to vector<24x128xf32>
    %73 = arith.mulf %72, %3 : vector<24x128xf32>
    %74 = arith.addf %70, %73 : vector<24x128xf32>
    %c3_37 = arith.constant 3 : index
    %75 = memref.load %arg2[%c3_37] : memref<10xf32, #tpu.memory_space<smem>>
    %76 = vector.broadcast %75 : f32 to vector<24x128xf32>
    %77 = arith.addf %74, %76 : vector<24x128xf32>
    %cst_38 = arith.constant 0.000000e+00 : f32
    %78 = vector.broadcast %cst_38 : f32 to vector<24x128xf32>
    %79 = arith.maximumf %77, %78 : vector<24x128xf32>
    %c0_39 = arith.constant 0 : index
    %c3_40 = arith.constant 3 : index
    %80 = memref.load %arg3[%c0_39, %c3_40] : memref<2x10xf32, #tpu.memory_space<smem>>
    %81 = vector.broadcast %80 : f32 to vector<24x128xf32>
    %82 = arith.mulf %81, %79 : vector<24x128xf32>
    %83 = arith.addf %63, %82 : vector<24x128xf32>
    %c1_41 = arith.constant 1 : index
    %c3_42 = arith.constant 3 : index
    %84 = memref.load %arg3[%c1_41, %c3_42] : memref<2x10xf32, #tpu.memory_space<smem>>
    %85 = vector.broadcast %84 : f32 to vector<24x128xf32>
    %86 = arith.mulf %85, %79 : vector<24x128xf32>
    %87 = arith.addf %67, %86 : vector<24x128xf32>
    %c4 = arith.constant 4 : index
    %c0_43 = arith.constant 0 : index
    %88 = memref.load %arg1[%c4, %c0_43] : memref<10x2xf32, #tpu.memory_space<smem>>
    %89 = vector.broadcast %88 : f32 to vector<24x128xf32>
    %90 = arith.mulf %89, %1 : vector<24x128xf32>
    %c4_44 = arith.constant 4 : index
    %c1_45 = arith.constant 1 : index
    %91 = memref.load %arg1[%c4_44, %c1_45] : memref<10x2xf32, #tpu.memory_space<smem>>
    %92 = vector.broadcast %91 : f32 to vector<24x128xf32>
    %93 = arith.mulf %92, %3 : vector<24x128xf32>
    %94 = arith.addf %90, %93 : vector<24x128xf32>
    %c4_46 = arith.constant 4 : index
    %95 = memref.load %arg2[%c4_46] : memref<10xf32, #tpu.memory_space<smem>>
    %96 = vector.broadcast %95 : f32 to vector<24x128xf32>
    %97 = arith.addf %94, %96 : vector<24x128xf32>
    %cst_47 = arith.constant 0.000000e+00 : f32
    %98 = vector.broadcast %cst_47 : f32 to vector<24x128xf32>
    %99 = arith.maximumf %97, %98 : vector<24x128xf32>
    %c0_48 = arith.constant 0 : index
    %c4_49 = arith.constant 4 : index
    %100 = memref.load %arg3[%c0_48, %c4_49] : memref<2x10xf32, #tpu.memory_space<smem>>
    %101 = vector.broadcast %100 : f32 to vector<24x128xf32>
    %102 = arith.mulf %101, %99 : vector<24x128xf32>
    %103 = arith.addf %83, %102 : vector<24x128xf32>
    %c1_50 = arith.constant 1 : index
    %c4_51 = arith.constant 4 : index
    %104 = memref.load %arg3[%c1_50, %c4_51] : memref<2x10xf32, #tpu.memory_space<smem>>
    %105 = vector.broadcast %104 : f32 to vector<24x128xf32>
    %106 = arith.mulf %105, %99 : vector<24x128xf32>
    %107 = arith.addf %87, %106 : vector<24x128xf32>
    %c5 = arith.constant 5 : index
    %c0_52 = arith.constant 0 : index
    %108 = memref.load %arg1[%c5, %c0_52] : memref<10x2xf32, #tpu.memory_space<smem>>
    %109 = vector.broadcast %108 : f32 to vector<24x128xf32>
    %110 = arith.mulf %109, %1 : vector<24x128xf32>
    %c5_53 = arith.constant 5 : index
    %c1_54 = arith.constant 1 : index
    %111 = memref.load %arg1[%c5_53, %c1_54] : memref<10x2xf32, #tpu.memory_space<smem>>
    %112 = vector.broadcast %111 : f32 to vector<24x128xf32>
    %113 = arith.mulf %112, %3 : vector<24x128xf32>
    %114 = arith.addf %110, %113 : vector<24x128xf32>
    %c5_55 = arith.constant 5 : index
    %115 = memref.load %arg2[%c5_55] : memref<10xf32, #tpu.memory_space<smem>>
    %116 = vector.broadcast %115 : f32 to vector<24x128xf32>
    %117 = arith.addf %114, %116 : vector<24x128xf32>
    %cst_56 = arith.constant 0.000000e+00 : f32
    %118 = vector.broadcast %cst_56 : f32 to vector<24x128xf32>
    %119 = arith.maximumf %117, %118 : vector<24x128xf32>
    %c0_57 = arith.constant 0 : index
    %c5_58 = arith.constant 5 : index
    %120 = memref.load %arg3[%c0_57, %c5_58] : memref<2x10xf32, #tpu.memory_space<smem>>
    %121 = vector.broadcast %120 : f32 to vector<24x128xf32>
    %122 = arith.mulf %121, %119 : vector<24x128xf32>
    %123 = arith.addf %103, %122 : vector<24x128xf32>
    %c1_59 = arith.constant 1 : index
    %c5_60 = arith.constant 5 : index
    %124 = memref.load %arg3[%c1_59, %c5_60] : memref<2x10xf32, #tpu.memory_space<smem>>
    %125 = vector.broadcast %124 : f32 to vector<24x128xf32>
    %126 = arith.mulf %125, %119 : vector<24x128xf32>
    %127 = arith.addf %107, %126 : vector<24x128xf32>
    %c6 = arith.constant 6 : index
    %c0_61 = arith.constant 0 : index
    %128 = memref.load %arg1[%c6, %c0_61] : memref<10x2xf32, #tpu.memory_space<smem>>
    %129 = vector.broadcast %128 : f32 to vector<24x128xf32>
    %130 = arith.mulf %129, %1 : vector<24x128xf32>
    %c6_62 = arith.constant 6 : index
    %c1_63 = arith.constant 1 : index
    %131 = memref.load %arg1[%c6_62, %c1_63] : memref<10x2xf32, #tpu.memory_space<smem>>
    %132 = vector.broadcast %131 : f32 to vector<24x128xf32>
    %133 = arith.mulf %132, %3 : vector<24x128xf32>
    %134 = arith.addf %130, %133 : vector<24x128xf32>
    %c6_64 = arith.constant 6 : index
    %135 = memref.load %arg2[%c6_64] : memref<10xf32, #tpu.memory_space<smem>>
    %136 = vector.broadcast %135 : f32 to vector<24x128xf32>
    %137 = arith.addf %134, %136 : vector<24x128xf32>
    %cst_65 = arith.constant 0.000000e+00 : f32
    %138 = vector.broadcast %cst_65 : f32 to vector<24x128xf32>
    %139 = arith.maximumf %137, %138 : vector<24x128xf32>
    %c0_66 = arith.constant 0 : index
    %c6_67 = arith.constant 6 : index
    %140 = memref.load %arg3[%c0_66, %c6_67] : memref<2x10xf32, #tpu.memory_space<smem>>
    %141 = vector.broadcast %140 : f32 to vector<24x128xf32>
    %142 = arith.mulf %141, %139 : vector<24x128xf32>
    %143 = arith.addf %123, %142 : vector<24x128xf32>
    %c1_68 = arith.constant 1 : index
    %c6_69 = arith.constant 6 : index
    %144 = memref.load %arg3[%c1_68, %c6_69] : memref<2x10xf32, #tpu.memory_space<smem>>
    %145 = vector.broadcast %144 : f32 to vector<24x128xf32>
    %146 = arith.mulf %145, %139 : vector<24x128xf32>
    %147 = arith.addf %127, %146 : vector<24x128xf32>
    %c7 = arith.constant 7 : index
    %c0_70 = arith.constant 0 : index
    %148 = memref.load %arg1[%c7, %c0_70] : memref<10x2xf32, #tpu.memory_space<smem>>
    %149 = vector.broadcast %148 : f32 to vector<24x128xf32>
    %150 = arith.mulf %149, %1 : vector<24x128xf32>
    %c7_71 = arith.constant 7 : index
    %c1_72 = arith.constant 1 : index
    %151 = memref.load %arg1[%c7_71, %c1_72] : memref<10x2xf32, #tpu.memory_space<smem>>
    %152 = vector.broadcast %151 : f32 to vector<24x128xf32>
    %153 = arith.mulf %152, %3 : vector<24x128xf32>
    %154 = arith.addf %150, %153 : vector<24x128xf32>
    %c7_73 = arith.constant 7 : index
    %155 = memref.load %arg2[%c7_73] : memref<10xf32, #tpu.memory_space<smem>>
    %156 = vector.broadcast %155 : f32 to vector<24x128xf32>
    %157 = arith.addf %154, %156 : vector<24x128xf32>
    %cst_74 = arith.constant 0.000000e+00 : f32
    %158 = vector.broadcast %cst_74 : f32 to vector<24x128xf32>
    %159 = arith.maximumf %157, %158 : vector<24x128xf32>
    %c0_75 = arith.constant 0 : index
    %c7_76 = arith.constant 7 : index
    %160 = memref.load %arg3[%c0_75, %c7_76] : memref<2x10xf32, #tpu.memory_space<smem>>
    %161 = vector.broadcast %160 : f32 to vector<24x128xf32>
    %162 = arith.mulf %161, %159 : vector<24x128xf32>
    %163 = arith.addf %143, %162 : vector<24x128xf32>
    %c1_77 = arith.constant 1 : index
    %c7_78 = arith.constant 7 : index
    %164 = memref.load %arg3[%c1_77, %c7_78] : memref<2x10xf32, #tpu.memory_space<smem>>
    %165 = vector.broadcast %164 : f32 to vector<24x128xf32>
    %166 = arith.mulf %165, %159 : vector<24x128xf32>
    %167 = arith.addf %147, %166 : vector<24x128xf32>
    %c8 = arith.constant 8 : index
    %c0_79 = arith.constant 0 : index
    %168 = memref.load %arg1[%c8, %c0_79] : memref<10x2xf32, #tpu.memory_space<smem>>
    %169 = vector.broadcast %168 : f32 to vector<24x128xf32>
    %170 = arith.mulf %169, %1 : vector<24x128xf32>
    %c8_80 = arith.constant 8 : index
    %c1_81 = arith.constant 1 : index
    %171 = memref.load %arg1[%c8_80, %c1_81] : memref<10x2xf32, #tpu.memory_space<smem>>
    %172 = vector.broadcast %171 : f32 to vector<24x128xf32>
    %173 = arith.mulf %172, %3 : vector<24x128xf32>
    %174 = arith.addf %170, %173 : vector<24x128xf32>
    %c8_82 = arith.constant 8 : index
    %175 = memref.load %arg2[%c8_82] : memref<10xf32, #tpu.memory_space<smem>>
    %176 = vector.broadcast %175 : f32 to vector<24x128xf32>
    %177 = arith.addf %174, %176 : vector<24x128xf32>
    %cst_83 = arith.constant 0.000000e+00 : f32
    %178 = vector.broadcast %cst_83 : f32 to vector<24x128xf32>
    %179 = arith.maximumf %177, %178 : vector<24x128xf32>
    %c0_84 = arith.constant 0 : index
    %c8_85 = arith.constant 8 : index
    %180 = memref.load %arg3[%c0_84, %c8_85] : memref<2x10xf32, #tpu.memory_space<smem>>
    %181 = vector.broadcast %180 : f32 to vector<24x128xf32>
    %182 = arith.mulf %181, %179 : vector<24x128xf32>
    %183 = arith.addf %163, %182 : vector<24x128xf32>
    %c1_86 = arith.constant 1 : index
    %c8_87 = arith.constant 8 : index
    %184 = memref.load %arg3[%c1_86, %c8_87] : memref<2x10xf32, #tpu.memory_space<smem>>
    %185 = vector.broadcast %184 : f32 to vector<24x128xf32>
    %186 = arith.mulf %185, %179 : vector<24x128xf32>
    %187 = arith.addf %167, %186 : vector<24x128xf32>
    %c9 = arith.constant 9 : index
    %c0_88 = arith.constant 0 : index
    %188 = memref.load %arg1[%c9, %c0_88] : memref<10x2xf32, #tpu.memory_space<smem>>
    %189 = vector.broadcast %188 : f32 to vector<24x128xf32>
    %190 = arith.mulf %189, %1 : vector<24x128xf32>
    %c9_89 = arith.constant 9 : index
    %c1_90 = arith.constant 1 : index
    %191 = memref.load %arg1[%c9_89, %c1_90] : memref<10x2xf32, #tpu.memory_space<smem>>
    %192 = vector.broadcast %191 : f32 to vector<24x128xf32>
    %193 = arith.mulf %192, %3 : vector<24x128xf32>
    %194 = arith.addf %190, %193 : vector<24x128xf32>
    %c9_91 = arith.constant 9 : index
    %195 = memref.load %arg2[%c9_91] : memref<10xf32, #tpu.memory_space<smem>>
    %196 = vector.broadcast %195 : f32 to vector<24x128xf32>
    %197 = arith.addf %194, %196 : vector<24x128xf32>
    %cst_92 = arith.constant 0.000000e+00 : f32
    %198 = vector.broadcast %cst_92 : f32 to vector<24x128xf32>
    %199 = arith.maximumf %197, %198 : vector<24x128xf32>
    %c0_93 = arith.constant 0 : index
    %c9_94 = arith.constant 9 : index
    %200 = memref.load %arg3[%c0_93, %c9_94] : memref<2x10xf32, #tpu.memory_space<smem>>
    %201 = vector.broadcast %200 : f32 to vector<24x128xf32>
    %202 = arith.mulf %201, %199 : vector<24x128xf32>
    %203 = arith.addf %183, %202 : vector<24x128xf32>
    %c1_95 = arith.constant 1 : index
    %c9_96 = arith.constant 9 : index
    %204 = memref.load %arg3[%c1_95, %c9_96] : memref<2x10xf32, #tpu.memory_space<smem>>
    %205 = vector.broadcast %204 : f32 to vector<24x128xf32>
    %206 = arith.mulf %205, %199 : vector<24x128xf32>
    %207 = arith.addf %187, %206 : vector<24x128xf32>
    %c0_97 = arith.constant 0 : index
    %c0_98 = arith.constant 0 : index
    %c0_99 = arith.constant 0 : index
    %208 = vector.load %arg6[%c0_97, %c0_98, %c0_99] : memref<2x24x128xf32, #tpu.memory_space<vmem>>, vector<1x24x128xf32>
    %209 = vector.shape_cast %208 : vector<1x24x128xf32> to vector<24x128xf32>
    %210 = vector.shape_cast %203 : vector<24x128xf32> to vector<1x24x128xf32>
    tpu.vector_store %arg6[%c0_97, %c0_98, %c0_99], %210 {strides = array<i32>} : memref<2x24x128xf32, #tpu.memory_space<vmem>>, vector<1x24x128xf32>,
    %c1_100 = arith.constant 1 : index
    %c0_101 = arith.constant 0 : index
    %c0_102 = arith.constant 0 : index
    %211 = vector.load %arg6[%c1_100, %c0_101, %c0_102] : memref<2x24x128xf32, #tpu.memory_space<vmem>>, vector<1x24x128xf32>
    %212 = vector.shape_cast %211 : vector<1x24x128xf32> to vector<24x128xf32>
    %213 = vector.shape_cast %207 : vector<24x128xf32> to vector<1x24x128xf32>
    tpu.vector_store %arg6[%c1_100, %c0_101, %c0_102], %213 {strides = array<i32>} : memref<2x24x128xf32, #tpu.memory_space<vmem>>, vector<1x24x128xf32>,
    return
  }
  func.func @transform_0(%arg0: i32) -> (i32, i32) {
    %c0_i32 = arith.constant 0 : i32
    %c0_i32_0 = arith.constant 0 : i32
    %c0_i32_1 = arith.constant 0 : i32
    return %c0_i32, %c0_i32_0 : i32, i32
  }
  func.func @transform_1(%arg0: i32) -> i32 {
    %c0_i32 = arith.constant 0 : i32
    %c0_i32_0 = arith.constant 0 : i32
    return %c0_i32 : i32
  }
  func.func @transform_2(%arg0: i32) -> (i32, i32) {
    %c0_i32 = arith.constant 0 : i32
    %c0_i32_0 = arith.constant 0 : i32
    %c0_i32_1 = arith.constant 0 : i32
    return %c0_i32, %c0_i32_0 : i32, i32
  }
  func.func @transform_3(%arg0: i32) -> i32 {
    %c0_i32 = arith.constant 0 : i32
    %c0_i32_0 = arith.constant 0 : i32
    return %c0_i32 : i32
  }
  func.func @transform_4(%arg0: i32) -> (i32, i32, i32) {
    %c0_i32 = arith.constant 0 : i32
    %c0_i32_0 = arith.constant 0 : i32
    %c0_i32_1 = arith.constant 0 : i32
    return %c0_i32, %arg0, %c0_i32_0 : i32, i32, i32
  }
  func.func @transform_5(%arg0: i32) -> (i32, i32, i32) {
    %c0_i32 = arith.constant 0 : i32
    %c0_i32_0 = arith.constant 0 : i32
    %c0_i32_1 = arith.constant 0 : i32
    return %c0_i32, %arg0, %c0_i32_0 : i32, i32, i32
  }
}

</mosaic_0001>

<llo_original>
// kernel: net2_forward.1
$region0: #{net2_forward.1}
  #allocation0 [shape = 'u32[]', space=smem, size = 0x4, offset = 0x4, fixed_abs, tag = 'smem constant byte address 0x4 - core index']
  #allocation1 [shape = 'u32[144,128]{1,0:T(1,128)}', space=vmem, size = 0x12000, scoped, tag = 'internal scratch']
  %s0 = inlined_call_operand.vmem [shape: f32[10,2], index: 0, kind: input, shape index: {}]
  %s1 = inlined_call_operand.vmem [shape: f32[10], index: 1, kind: input, shape index: {}]
  %s2 = inlined_call_operand.vmem [shape: f32[2,10], index: 2, kind: input, shape index: {}]
  %s3 = inlined_call_operand.vmem [shape: f32[2], index: 3, kind: input, shape index: {}]
  %s4 = inlined_call_operand.vmem [shape: f32[2,48,128], index: 4, kind: input, shape index: {}]
  %s5 = inlined_call_operand.vmem [shape: f32[2,48,128], index: 5, kind: output, shape index: {}]
  %s6 = sld [smem:[#allocation0]]
  $region141: #{net2_forward.1} parent=0
    _
  %s8 = ssub.s32 1, %s6
  %s9 = scalar_select 0, %s8, %s6
  $region1: #{net2_forward.1} parent=0
    #allocation2 [shape = 'u8[8192]{0}', space=smem, size = 0x2000, scoped, tag = 'input window, operand 0, single buffered']
    #allocation3 [shape = 's32[2]{0}', space=sflag, size = 0x8, scoped, tag = 'scoped memory for net2_forward.1']
    #allocation4 [shape = 'u8[512]{0}', space=smem, size = 0x200, scoped, tag = 'input window, operand 1, single buffered']
    #allocation5 [shape = 's32[1]{0}', space=sflag, size = 0x4, scoped, tag = 'scoped memory for net2_forward.1']
    #allocation6 [shape = 'u8[1024]{0}', space=smem, size = 0x400, scoped, tag = 'input window, operand 2, single buffered']
    #allocation7 [shape = 'u8[512]{0}', space=smem, size = 0x200, scoped, tag = 'input window, operand 3, single buffered']
    #allocation8 [shape = 's32[1]{0}', space=sflag, size = 0x4, scoped, tag = 'scoped memory for net2_forward.1']
    #allocation9 [shape = 'u8[49152]{0}', space=vmem, size = 0xc000, scoped, tag = 'input window, operand 4']
    #allocation10 [shape = 'u8[49152]{0}', space=vmem, size = 0xc000, scoped, tag = 'output window, operand 0']
    %10 = vsyncpa [#allocation3], 0
    %11 = vsyncpa [#allocation5], 0
    %12 = vsyncpa [#allocation8], 0
    loop: start=0, step=1, limit=4
    $region2: #{net2_forward.1} parent=1 // loop_pre_header
      _
    $region3: #{net2_forward.1} parent=1 // loop_header
      %s14 = sphi 0, %s18
      %p15 = scmp.ge.s32.totalorder %s14, 4
      %s22 = sphi 0, %s22
      %s24 = sphi 0, %s22
      %s25 = sphi 0, %s24
      %s39 = sphi 0, %s25
      %s43 = sphi 0, %s43
      %s45 = sphi 0, %s43
      %s46 = sphi 0, %s45
      %s60 = sphi 0, %s46
      %s64 = sphi 0, %s64
      %s66 = sphi 0, %s64
      %s67 = sphi 0, %s66
      %s81 = sphi 0, %s67
      %s85 = sphi 0, %s85
      %s87 = sphi 0, %s85
      %s88 = sphi 0, %s87
      %s102 = sphi 0, %s88
      %s108 = sphi 0, %s110
      %s111 = sphi 0, %s108
      %s112 = sphi 0, %s111
      %s128 = sphi 0, %s112
      %s134 = sphi 0, %s136
      %s137 = sphi 0, %s134
      %s138 = sphi 0, %s137
      %s154 = sphi 0, %s138
    $region4: #{net2_forward.1} parent=1 // loop_header_branch
      %17 = sbr.rel (%p15) target = $region8
    $region5: #{net2_forward.1} parent=1 // loop_body
      %s19 = ssub.s32 %s14, 1
      %s20 = ssub.s32 %s14, 2
      %s21 = sadd.s32 %s14, 1
      %s23 = sadd.s32 %s22, 1
      %p26 = scmp.eq.s32.totalorder %s14, 1
      %p27 = scmp.ne.s32.totalorder %s22, %s24
      %p28 = scmp.eq.s32.totalorder %s14, 0
      %p29 = por %p27, %p28
      %p30 = scmp.ne.s32.totalorder %s22, %s24
      %p31 = scmp.eq.s32.totalorder %s19, 1
      %p32 = por %p30, %p31
      %p33 = scmp.ne.s32.totalorder %s24, %s25
      %p34 = scmp.eq.s32.totalorder %s19, 0
      %p35 = por %p33, %p34
      %p36 = scmp.ne.s32.totalorder %s24, %s25
      %p37 = scmp.eq.s32.totalorder %s20, 1
      %p38 = por %p36, %p37
      %p40 = scmp.ne.s32.totalorder %s25, %s39
      %p41 = scmp.eq.s32.totalorder %s20, 0
      %p42 = por %p40, %p41
      %s44 = sadd.s32 %s43, 1
      %p47 = scmp.eq.s32.totalorder %s14, 1
      %p48 = scmp.ne.s32.totalorder %s43, %s45
      %p49 = scmp.eq.s32.totalorder %s14, 0
      %p50 = por %p48, %p49
      %p51 = scmp.ne.s32.totalorder %s43, %s45
      %p52 = scmp.eq.s32.totalorder %s19, 1
      %p53 = por %p51, %p52
      %p54 = scmp.ne.s32.totalorder %s45, %s46
      %p55 = scmp.eq.s32.totalorder %s19, 0
      %p56 = por %p54, %p55
      %p57 = scmp.ne.s32.totalorder %s45, %s46
      %p58 = scmp.eq.s32.totalorder %s20, 1
      %p59 = por %p57, %p58
      %p61 = scmp.ne.s32.totalorder %s46, %s60
      %p62 = scmp.eq.s32.totalorder %s20, 0
      %p63 = por %p61, %p62
      %s65 = sadd.s32 %s64, 1
      %p68 = scmp.eq.s32.totalorder %s14, 1
      %p69 = scmp.ne.s32.totalorder %s64, %s66
      %p70 = scmp.eq.s32.totalorder %s14, 0
      %p71 = por %p69, %p70
      %p72 = scmp.ne.s32.totalorder %s64, %s66
      %p73 = scmp.eq.s32.totalorder %s19, 1
      %p74 = por %p72, %p73
      %p75 = scmp.ne.s32.totalorder %s66, %s67
      %p76 = scmp.eq.s32.totalorder %s19, 0
      %p77 = por %p75, %p76
      %p78 = scmp.ne.s32.totalorder %s66, %s67
      %p79 = scmp.eq.s32.totalorder %s20, 1
      %p80 = por %p78, %p79
      %p82 = scmp.ne.s32.totalorder %s67, %s81
      %p83 = scmp.eq.s32.totalorder %s20, 0
      %p84 = por %p82, %p83
      %s86 = sadd.s32 %s85, 1
      %p89 = scmp.eq.s32.totalorder %s14, 1
      %p90 = scmp.ne.s32.totalorder %s85, %s87
      %p91 = scmp.eq.s32.totalorder %s14, 0
      %p92 = por %p90, %p91
      %p93 = scmp.ne.s32.totalorder %s85, %s87
      %p94 = scmp.eq.s32.totalorder %s19, 1
      %p95 = por %p93, %p94
      %p96 = scmp.ne.s32.totalorder %s87, %s88
      %p97 = scmp.eq.s32.totalorder %s19, 0
      %p98 = por %p96, %p97
      %p99 = scmp.ne.s32.totalorder %s87, %s88
      %p100 = scmp.eq.s32.totalorder %s20, 1
      %p101 = por %p99, %p100
      %p103 = scmp.ne.s32.totalorder %s88, %s102
      %p104 = scmp.eq.s32.totalorder %s20, 0
      %p105 = por %p103, %p104
      %s106 = ssub.s32 %s14, %s21
      %p107 = scmp.eq.s32.totalorder %s106, 0
      %s109 = sadd.s32 %s108, 1
      %s110 = scalar_select %p107, %s108, %s109
      %p113 = pneg %p107
      %p114 = scmp.eq.s32.totalorder %s14, 1
      %p115 = por %p113, %p114
      %p116 = scmp.ne.s32.totalorder %s108, %s111
      %p117 = scmp.eq.s32.totalorder %s14, 0
      %p118 = por %p116, %p117
      %p119 = scmp.ne.s32.totalorder %s108, %s111
      %p120 = scmp.eq.s32.totalorder %s19, 1
      %p121 = por %p119, %p120
      %p122 = scmp.ne.s32.totalorder %s111, %s112
      %p123 = scmp.eq.s32.totalorder %s19, 0
      %p124 = por %p122, %p123
      %p125 = scmp.ne.s32.totalorder %s111, %s112
      %p126 = scmp.eq.s32.totalorder %s20, 1
      %p127 = por %p125, %p126
      %p129 = scmp.ne.s32.totalorder %s112, %s128
      %p130 = scmp.eq.s32.totalorder %s20, 0
      %p131 = por %p129, %p130
      %s132 = ssub.s32 %s14, %s21
      %p133 = scmp.eq.s32.totalorder %s132, 0
      %s135 = sadd.s32 %s134, 1
      %s136 = scalar_select %p133, %s134, %s135
      %p139 = pneg %p133
      %p140 = scmp.eq.s32.totalorder %s14, 1
      %p141 = por %p139, %p140
      %p142 = scmp.ne.s32.totalorder %s134, %s137
      %p143 = scmp.eq.s32.totalorder %s14, 0
      %p144 = por %p142, %p143
      %p145 = scmp.ne.s32.totalorder %s134, %s137
      %p146 = scmp.eq.s32.totalorder %s19, 1
      %p147 = por %p145, %p146
      %p148 = scmp.ne.s32.totalorder %s137, %s138
      %p149 = scmp.eq.s32.totalorder %s19, 0
      %p150 = por %p148, %p149
      %p151 = scmp.ne.s32.totalorder %s137, %s138
      %p152 = scmp.eq.s32.totalorder %s20, 1
      %p153 = por %p151, %p152
      %p155 = scmp.ne.s32.totalorder %s138, %s154
      %p156 = scmp.eq.s32.totalorder %s20, 0
      %p157 = por %p155, %p156
      %p158 = scmp.le.s32.totalorder 1, %s14
      %p159 = scmp.lt.s32.totalorder %s14, 3
      %p160 = pnand %p158, %p159
      %p161 = pneg %p160
      // Predicated region
      $region9: #{net2_forward.1} parent=5 // pred_check
        _
      $region10: #{net2_forward.1} parent=5 // pred_check_branch
        %163 = sbr.rel (%p160) target = $region12
      $region11: #{net2_forward.1} parent=5 // pred_region
        %s164 = ssub.s32 %s14, 1
        // Predicated region
        $region13: #{net2_forward.1} parent=11 // pred_check
          %p165 = pneg %p35
        $region14: #{net2_forward.1} parent=11 // pred_check_branch
          %167 = sbr.rel (%p165) target = $region16
        $region15: #{net2_forward.1} parent=11 // pred_region
          %s169 = ssub.s32 256, 256
          %170 = vsyncadd [#allocation3], %s169
          %s171 = sshll.u32 %s0, 4
          %s172 = int_to_ptr.vmem [resolvable:$true] %s171
          %177 = dma.vmem_to_smem %s172, 256, [#allocation2], [#allocation3], 128, 128, 8
        $region16: #{net2_forward.1} parent=11 // pred_fallthru
          _
        // Predicated region
        $region17: #{net2_forward.1} parent=11 // pred_check
          %p178 = pneg %p56
        $region18: #{net2_forward.1} parent=11 // pred_check_branch
          %180 = sbr.rel (%p178) target = $region20
        $region19: #{net2_forward.1} parent=11 // pred_region
          %s182 = ssub.s32 16, 16
          %183 = vsyncadd [#allocation5], %s182
          %s185 = sshll.u32 %s1, 4
          %s186 = int_to_ptr.vmem [resolvable:$true] %s185
          %188 = dma.vmem_to_smem %s186, 16, [#allocation4], [#allocation5]
        $region20: #{net2_forward.1} parent=11 // pred_fallthru
          _
        // Predicated region
        $region21: #{net2_forward.1} parent=11 // pred_check
          %p189 = pneg %p77
        $region22: #{net2_forward.1} parent=11 // pred_check_branch
          %191 = sbr.rel (%p189) target = $region24
        $region23: #{net2_forward.1} parent=11 // pred_region
          %s193 = ssub.s32 32, 32
          %194 = vsyncadd [#allocation5], %s193
          %s196 = sshll.u32 %s2, 4
          %s197 = int_to_ptr.vmem [resolvable:$true] %s196
          %199 = dma.vmem_to_smem %s197, 32, [#allocation6], [#allocation5]
        $region24: #{net2_forward.1} parent=11 // pred_fallthru
          _
        // Predicated region
        $region25: #{net2_forward.1} parent=11 // pred_check
          %p200 = pneg %p98
        $region26: #{net2_forward.1} parent=11 // pred_check_branch
          %202 = sbr.rel (%p200) target = $region28
        $region27: #{net2_forward.1} parent=11 // pred_region
          %s204 = ssub.s32 16, 16
          %205 = vsyncadd [#allocation8], %s204
          %s207 = sshll.u32 %s3, 4
          %s208 = int_to_ptr.vmem [resolvable:$true] %s207
          %210 = dma.vmem_to_smem %s208, 16, [#allocation7], [#allocation8]
        $region28: #{net2_forward.1} parent=11 // pred_fallthru
          _
      $region12: #{net2_forward.1} parent=5 // pred_fallthru
        _
      %p211 = scmp.lt.s32.totalorder %s14, 2
      // Predicated region
      $region29: #{net2_forward.1} parent=5 // pred_check
        %p212 = pneg %p211
      $region30: #{net2_forward.1} parent=5 // pred_check_branch
        %214 = sbr.rel (%p212) target = $region32
      $region31: #{net2_forward.1} parent=5 // pred_region
        // Predicated region
        $region33: #{net2_forward.1} parent=31 // pred_check
          %p215 = pneg %p118
        $region34: #{net2_forward.1} parent=31 // pred_check_branch
          %217 = sbr.rel (%p215) target = $region36
        $region35: #{net2_forward.1} parent=31 // pred_region
          %s218 = sand.u32 %s108, 1
          %s219 = sand.u32 %s108, 1
          %s220 = smul.addr %s219, 48
          %s221 = scalar_lea.vmem [#allocation9], %s220
          %s222 = smul.u32 3, %s14
          %s223 = smul.addr %s222, 8
          %s224 = scalar_lea.vmem %s4, %s223
          // Predicated region
          $region37: #{net2_forward.1} parent=35 // pred_check
            _
          $region38: #{net2_forward.1} parent=35 // pred_check_branch
            %226 = sbr.rel (0) target = $region40
          $region39: #{net2_forward.1} parent=35 // pred_region
            // Predicated region
            $region41: #{net2_forward.1} parent=39 // pred_check
              _
            $region42: #{net2_forward.1} parent=39 // pred_check_branch
              %228 = sbr.rel (0) target = $region44
            $region43: #{net2_forward.1} parent=39 // pred_region
              // Predicated region
              $region56: #{net2_forward.1} parent=43 // pred_check
                _
              $region57: #{net2_forward.1} parent=43 // pred_check_branch
                %254 = sbr.rel (0) target = $region59
              $region58: #{net2_forward.1} parent=43 // pred_region
                loop: start=0, step=1, limit=1
                $region60: #{net2_forward.1} parent=58 // loop_pre_header
                  _
                $region61: #{net2_forward.1} parent=58 // loop_header
                  %s256 = sphi 0, %s260
                  %p257 = scmp.ge.s32.totalorder %s256, 1
                  %s261 = sphi %s224, %s224
                  %s262 = sphi %s221, %s221
                $region62: #{net2_forward.1} parent=58 // loop_header_branch
                  %259 = sbr.rel (%p257) target = $region66
                $region63: #{net2_forward.1} parent=58 // loop_body
                  %v263 = vld [vmem:[%s261] sm:$0xff]
                  %264 = vst [vmem:[%s262] sm:$0xff] %v263
                  %v265 = vld [vmem:[%s261 + $0x8] sm:$0xff]
                  %266 = vst [vmem:[%s262 + $0x8] sm:$0xff] %v265
                  %v267 = vld [vmem:[%s261 + $0x10] sm:$0xff]
                  %268 = vst [vmem:[%s262 + $0x10] sm:$0xff] %v267
                  %v269 = vld [vmem:[%s261 + $0x30] sm:$0xff]
                  %270 = vst [vmem:[%s262 + $0x18] sm:$0xff] %v269
                  %v271 = vld [vmem:[%s261 + $0x38] sm:$0xff]
                  %272 = vst [vmem:[%s262 + $0x20] sm:$0xff] %v271
                  %v273 = vld [vmem:[%s261 + $0x40] sm:$0xff]
                  %274 = vst [vmem:[%s262 + $0x28] sm:$0xff] %v273
                $region64: #{net2_forward.1} parent=58 // loop_footer
                  %s260 = sadd.s32 1, %s256
                $region65: #{net2_forward.1} parent=58 // loop_footer_branch
                  %255 = sbr.rel target = $region61
                $region66: #{net2_forward.1} parent=58 // loop_exit
                  _
              $region59: #{net2_forward.1} parent=43 // pred_fallthru
                _
              // Predicated region
              $region67: #{net2_forward.1} parent=43 // pred_check
                _
              $region68: #{net2_forward.1} parent=43 // pred_check_branch
                %276 = sbr.rel target = $region70
              $region69: #{net2_forward.1} parent=43 // pred_region
                _
              $region70: #{net2_forward.1} parent=43 // pred_fallthru
                _
            $region44: #{net2_forward.1} parent=39 // pred_fallthru
              _
            // Predicated region
            $region45: #{net2_forward.1} parent=39 // pred_check
              _
            $region46: #{net2_forward.1} parent=39 // pred_check_branch
              %230 = sbr.rel target = $region48
            $region47: #{net2_forward.1} parent=39 // pred_region
              %s232 = ssub.s32 256, 1
              loop: start=0, step=1, limit=1
              $region49: #{net2_forward.1} parent=47 // loop_pre_header
                _
              $region50: #{net2_forward.1} parent=47 // loop_header
                %s234 = sphi 0, %s238
                %p235 = scmp.ge.s32.totalorder %s234, 1
                %s239 = sphi %s224, %s224
                %s240 = sphi %s221, %s221
              $region51: #{net2_forward.1} parent=47 // loop_header_branch
                %237 = sbr.rel (%p235) target = $region55
              $region52: #{net2_forward.1} parent=47 // loop_body
                %v241 = vld [vmem:[%s239] sm:%s232]
                %242 = vst [vmem:[%s240] sm:%s232] %v241
                %v243 = vld [vmem:[%s239 + $0x8] sm:%s232]
                %244 = vst [vmem:[%s240 + $0x8] sm:%s232] %v243
                %v245 = vld [vmem:[%s239 + $0x10] sm:%s232]
                %246 = vst [vmem:[%s240 + $0x10] sm:%s232] %v245
                %v247 = vld [vmem:[%s239 + $0x30] sm:%s232]
                %248 = vst [vmem:[%s240 + $0x18] sm:%s232] %v247
                %v249 = vld [vmem:[%s239 + $0x38] sm:%s232]
                %250 = vst [vmem:[%s240 + $0x20] sm:%s232] %v249
                %v251 = vld [vmem:[%s239 + $0x40] sm:%s232]
                %252 = vst [vmem:[%s240 + $0x28] sm:%s232] %v251
              $region53: #{net2_forward.1} parent=47 // loop_footer
                %s238 = sadd.s32 1, %s234
              $region54: #{net2_forward.1} parent=47 // loop_footer_branch
                %233 = sbr.rel target = $region50
              $region55: #{net2_forward.1} parent=47 // loop_exit
                _
            $region48: #{net2_forward.1} parent=39 // pred_fallthru
              _
          $region40: #{net2_forward.1} parent=35 // pred_fallthru
            _
          %277 = vnop
        $region36: #{net2_forward.1} parent=31 // pred_fallthru
          _
      $region32: #{net2_forward.1} parent=5 // pred_fallthru
        _
      %p278 = scmp.le.s32.totalorder 1, %s14
      %p279 = scmp.lt.s32.totalorder %s14, 3
      %p280 = pnand %p278, %p279
      %p281 = pneg %p280
      // Predicated region
      $region71: #{net2_forward.1} parent=5 // pred_check
        _
      $region72: #{net2_forward.1} parent=5 // pred_check_branch
        %283 = sbr.rel (%p280) target = $region74
      $region73: #{net2_forward.1} parent=5 // pred_region
        %s284 = ssub.s32 %s14, 1
        // Predicated region
        $region75: #{net2_forward.1} parent=73 // pred_check
          %p285 = pneg %p35
        $region76: #{net2_forward.1} parent=73 // pred_check_branch
          %287 = sbr.rel (%p285) target = $region78
        $region77: #{net2_forward.1} parent=73 // pred_region
          %288 = dma.done [#allocation3], 256
        $region78: #{net2_forward.1} parent=73 // pred_fallthru
          _
        // Predicated region
        $region79: #{net2_forward.1} parent=73 // pred_check
          %p289 = pneg %p56
        $region80: #{net2_forward.1} parent=73 // pred_check_branch
          %291 = sbr.rel (%p289) target = $region82
        $region81: #{net2_forward.1} parent=73 // pred_region
          %292 = dma.done [#allocation5], 16
        $region82: #{net2_forward.1} parent=73 // pred_fallthru
          _
        // Predicated region
        $region83: #{net2_forward.1} parent=73 // pred_check
          %p293 = pneg %p77
        $region84: #{net2_forward.1} parent=73 // pred_check_branch
          %295 = sbr.rel (%p293) target = $region86
        $region85: #{net2_forward.1} parent=73 // pred_region
          %296 = dma.done [#allocation5], 32
        $region86: #{net2_forward.1} parent=73 // pred_fallthru
          _
        // Predicated region
        $region87: #{net2_forward.1} parent=73 // pred_check
          %p297 = pneg %p98
        $region88: #{net2_forward.1} parent=73 // pred_check_branch
          %299 = sbr.rel (%p297) target = $region90
        $region89: #{net2_forward.1} parent=73 // pred_region
          %300 = dma.done [#allocation8], 16
        $region90: #{net2_forward.1} parent=73 // pred_fallthru
          _
        %s301 = sand.u32 %s111, 1
        %s302 = sand.u32 %s111, 1
        %s303 = smul.addr %s302, 48
        %s304 = scalar_lea.vmem [#allocation9], %s303
        // Predicated region
        $region91: #{net2_forward.1} parent=73 // pred_check
          %p305 = pneg %p124
        $region92: #{net2_forward.1} parent=73 // pred_check_branch
          %307 = sbr.rel (%p305) target = $region94
        $region93: #{net2_forward.1} parent=73 // pred_region
          _
        $region94: #{net2_forward.1} parent=73 // pred_fallthru
          _
        %308 = sfence
        %p309 = pneg %p35
        %p310 = pneg %p32
        %p311 = pneg %p56
        %p312 = pneg %p53
        %p313 = pneg %p77
        %p314 = pneg %p74
        %p315 = pneg %p98
        %p316 = pneg %p95
        %s317 = sand.u32 %s111, 1
        %s318 = sand.u32 %s111, 1
        %s319 = smul.addr %s318, 48
        %s320 = scalar_lea.vmem [#allocation9], %s319
        %p321 = pneg %p124
        %p322 = pneg %p121
        %p323 = pneg %p150
        %p324 = pneg %p147
        %s325 = sand.u32 %s137, 1
        %s326 = sand.u32 %s137, 1
        %s327 = smul.addr %s326, 48
        %s328 = scalar_lea.vmem [#allocation10], %s327
        %s329 = smul.u32 3, %s19
        %s330 = smul.u32 3, %s19
        %v331 = vld [vmem:[%s304] sm:$0xff]
        %v332 = vld [vmem:[%s304 + $0x8] sm:$0xff]
        %v333 = vld [vmem:[%s304 + $0x10] sm:$0xff]
        %s334 = scalar_lea.vmem %s304, 24 [#allocation9]
        %v335 = vld [vmem:[%s334] sm:$0xff]
        %v336 = vld [vmem:[%s334 + $0x8] sm:$0xff]
        %v337 = vld [vmem:[%s334 + $0x10] sm:$0xff]
        %s338 = sld [smem:[#allocation7]]
        %v339 = vstv %s338
        %s340 = sld [smem:[#allocation7 + $0x1]]
        %v341 = vstv %s340
        %s342 = sld [smem:[#allocation2]]
        %v343 = vstv %s342
        %v344 = vmul.f32 %v343, %v331
        %v345 = vmul.f32 %v343, %v332
        %v346 = vmul.f32 %v343, %v333
        %s347 = sld [smem:[#allocation2 + $0x1]]
        %v348 = vstv %s347
        %v349 = vmul.f32 %v348, %v335
        %v350 = vmul.f32 %v348, %v336
        %v351 = vmul.f32 %v348, %v337
        %v352 = vadd.f32 %v344, %v349
        %v353 = vadd.f32 %v345, %v350
        %v354 = vadd.f32 %v346, %v351
        %s355 = sld [smem:[#allocation4]]
        %v356 = vstv %s355
        %v357 = vadd.f32 %v352, %v356
        %v358 = vadd.f32 %v353, %v356
        %v359 = vadd.f32 %v354, %v356
        %v360 = vmax.f32 %v357, 0.0
        %v361 = vmax.f32 %v358, 0.0
        %v362 = vmax.f32 %v359, 0.0
        %s363 = sld [smem:[#allocation6]]
        %v364 = vstv %s363
        %v365 = vmul.f32 %v364, %v360
        %v366 = vmul.f32 %v364, %v361
        %v367 = vmul.f32 %v364, %v362
        %v368 = vadd.f32 %v339, %v365
        %v369 = vadd.f32 %v339, %v366
        %v370 = vadd.f32 %v339, %v367
        %s371 = sld [smem:[#allocation6 + $0x80]]
        %v372 = vstv %s371
        %v373 = vmul.f32 %v372, %v360
        %v374 = vmul.f32 %v372, %v361
        %v375 = vmul.f32 %v372, %v362
        %v376 = vadd.f32 %v341, %v373
        %v377 = vadd.f32 %v341, %v374
        %v378 = vadd.f32 %v341, %v375
        %s379 = sld [smem:[#allocation2 + $0x80]]
        %v380 = vstv %s379
        %v381 = vmul.f32 %v380, %v331
        %v382 = vmul.f32 %v380, %v332
        %v383 = vmul.f32 %v380, %v333
        %s384 = sld [smem:[#allocation2 + $0x81]]
        %v385 = vstv %s384
        %v386 = vmul.f32 %v385, %v335
        %v387 = vmul.f32 %v385, %v336
        %v388 = vmul.f32 %v385, %v337
        %v389 = vadd.f32 %v381, %v386
        %v390 = vadd.f32 %v382, %v387
        %v391 = vadd.f32 %v383, %v388
        %s392 = sld [smem:[#allocation4 + $0x1]]
        %v393 = vstv %s392
        %v394 = vadd.f32 %v389, %v393
        %v395 = vadd.f32 %v390, %v393
        %v396 = vadd.f32 %v391, %v393
        %v397 = vmax.f32 %v394, 0.0
        %v398 = vmax.f32 %v395, 0.0
        %v399 = vmax.f32 %v396, 0.0
        %s400 = sld [smem:[#allocation6 + $0x1]]
        %v401 = vstv %s400
        %v402 = vmul.f32 %v401, %v397
        %v403 = vmul.f32 %v401, %v398
        %v404 = vmul.f32 %v401, %v399
        %v405 = vadd.f32 %v368, %v402
        %v406 = vadd.f32 %v369, %v403
        %v407 = vadd.f32 %v370, %v404
        %s408 = sld [smem:[#allocation6 + $0x81]]
        %v409 = vstv %s408
        %v410 = vmul.f32 %v409, %v397
        %v411 = vmul.f32 %v409, %v398
        %v412 = vmul.f32 %v409, %v399
        %v413 = vadd.f32 %v376, %v410
        %v414 = vadd.f32 %v377, %v411
        %v415 = vadd.f32 %v378, %v412
        %s416 = sld [smem:[#allocation2 + $0x100]]
        %v417 = vstv %s416
        %v418 = vmul.f32 %v417, %v331
        %v419 = vmul.f32 %v417, %v332
        %v420 = vmul.f32 %v417, %v333
        %s421 = sld [smem:[#allocation2 + $0x101]]
        %v422 = vstv %s421
        %v423 = vmul.f32 %v422, %v335
        %v424 = vmul.f32 %v422, %v336
        %v425 = vmul.f32 %v422, %v337
        %v426 = vadd.f32 %v418, %v423
        %v427 = vadd.f32 %v419, %v424
        %v428 = vadd.f32 %v420, %v425
        %s429 = sld [smem:[#allocation4 + $0x2]]
        %v430 = vstv %s429
        %v431 = vadd.f32 %v426, %v430
        %v432 = vadd.f32 %v427, %v430
        %v433 = vadd.f32 %v428, %v430
        %v434 = vmax.f32 %v431, 0.0
        %v435 = vmax.f32 %v432, 0.0
        %v436 = vmax.f32 %v433, 0.0
        %s437 = sld [smem:[#allocation6 + $0x2]]
        %v438 = vstv %s437
        %v439 = vmul.f32 %v438, %v434
        %v440 = vmul.f32 %v438, %v435
        %v441 = vmul.f32 %v438, %v436
        %v442 = vadd.f32 %v405, %v439
        %v443 = vadd.f32 %v406, %v440
        %v444 = vadd.f32 %v407, %v441
        %s445 = sld [smem:[#allocation6 + $0x82]]
        %v446 = vstv %s445
        %v447 = vmul.f32 %v446, %v434
        %v448 = vmul.f32 %v446, %v435
        %v449 = vmul.f32 %v446, %v436
        %v450 = vadd.f32 %v413, %v447
        %v451 = vadd.f32 %v414, %v448
        %v452 = vadd.f32 %v415, %v449
        %s453 = sld [smem:[#allocation2 + $0x180]]
        %v454 = vstv %s453
        %v455 = vmul.f32 %v454, %v331
        %v456 = vmul.f32 %v454, %v332
        %v457 = vmul.f32 %v454, %v333
        %s458 = sld [smem:[#allocation2 + $0x181]]
        %v459 = vstv %s458
        %v460 = vmul.f32 %v459, %v335
        %v461 = vmul.f32 %v459, %v336
        %v462 = vmul.f32 %v459, %v337
        %v463 = vadd.f32 %v455, %v460
        %v464 = vadd.f32 %v456, %v461
        %v465 = vadd.f32 %v457, %v462
        %s466 = sld [smem:[#allocation4 + $0x3]]
        %v467 = vstv %s466
        %v468 = vadd.f32 %v463, %v467
        %v469 = vadd.f32 %v464, %v467
        %v470 = vadd.f32 %v465, %v467
        %v471 = vmax.f32 %v468, 0.0
        %v472 = vmax.f32 %v469, 0.0
        %v473 = vmax.f32 %v470, 0.0
        %s474 = sld [smem:[#allocation6 + $0x3]]
        %v475 = vstv %s474
        %v476 = vmul.f32 %v475, %v471
        %v477 = vmul.f32 %v475, %v472
        %v478 = vmul.f32 %v475, %v473
        %v479 = vadd.f32 %v442, %v476
        %v480 = vadd.f32 %v443, %v477
        %v481 = vadd.f32 %v444, %v478
        %s482 = sld [smem:[#allocation6 + $0x83]]
        %v483 = vstv %s482
        %v484 = vmul.f32 %v483, %v471
        %v485 = vmul.f32 %v483, %v472
        %v486 = vmul.f32 %v483, %v473
        %v487 = vadd.f32 %v450, %v484
        %v488 = vadd.f32 %v451, %v485
        %v489 = vadd.f32 %v452, %v486
        %s490 = sld [smem:[#allocation2 + $0x200]]
        %v491 = vstv %s490
        %v492 = vmul.f32 %v491, %v331
        %v493 = vmul.f32 %v491, %v332
        %v494 = vmul.f32 %v491, %v333
        %s495 = sld [smem:[#allocation2 + $0x201]]
        %v496 = vstv %s495
        %v497 = vmul.f32 %v496, %v335
        %v498 = vmul.f32 %v496, %v336
        %v499 = vmul.f32 %v496, %v337
        %v500 = vadd.f32 %v492, %v497
        %v501 = vadd.f32 %v493, %v498
        %v502 = vadd.f32 %v494, %v499
        %s503 = sld [smem:[#allocation4 + $0x4]]
        %v504 = vstv %s503
        %v505 = vadd.f32 %v500, %v504
        %v506 = vadd.f32 %v501, %v504
        %v507 = vadd.f32 %v502, %v504
        %v508 = vmax.f32 %v505, 0.0
        %v509 = vmax.f32 %v506, 0.0
        %v510 = vmax.f32 %v507, 0.0
        %s511 = sld [smem:[#allocation6 + $0x4]]
        %v512 = vstv %s511
        %v513 = vmul.f32 %v512, %v508
        %v514 = vmul.f32 %v512, %v509
        %v515 = vmul.f32 %v512, %v510
        %v516 = vadd.f32 %v479, %v513
        %v517 = vadd.f32 %v480, %v514
        %v518 = vadd.f32 %v481, %v515
        %s519 = sld [smem:[#allocation6 + $0x84]]
        %v520 = vstv %s519
        %v521 = vmul.f32 %v520, %v508
        %v522 = vmul.f32 %v520, %v509
        %v523 = vmul.f32 %v520, %v510
        %v524 = vadd.f32 %v487, %v521
        %v525 = vadd.f32 %v488, %v522
        %v526 = vadd.f32 %v489, %v523
        %s527 = sld [smem:[#allocation2 + $0x280]]
        %v528 = vstv %s527
        %v529 = vmul.f32 %v528, %v331
        %v530 = vmul.f32 %v528, %v332
        %v531 = vmul.f32 %v528, %v333
        %s532 = sld [smem:[#allocation2 + $0x281]]
        %v533 = vstv %s532
        %v534 = vmul.f32 %v533, %v335
        %v535 = vmul.f32 %v533, %v336
        %v536 = vmul.f32 %v533, %v337
        %v537 = vadd.f32 %v529, %v534
        %v538 = vadd.f32 %v530, %v535
        %v539 = vadd.f32 %v531, %v536
        %s540 = sld [smem:[#allocation4 + $0x5]]
        %v541 = vstv %s540
        %v542 = vadd.f32 %v537, %v541
        %v543 = vadd.f32 %v538, %v541
        %v544 = vadd.f32 %v539, %v541
        %v545 = vmax.f32 %v542, 0.0
        %v546 = vmax.f32 %v543, 0.0
        %v547 = vmax.f32 %v544, 0.0
        %s548 = sld [smem:[#allocation6 + $0x5]]
        %v549 = vstv %s548
        %v550 = vmul.f32 %v549, %v545
        %v551 = vmul.f32 %v549, %v546
        %v552 = vmul.f32 %v549, %v547
        %v553 = vadd.f32 %v516, %v550
        %v554 = vadd.f32 %v517, %v551
        %v555 = vadd.f32 %v518, %v552
        %s556 = sld [smem:[#allocation6 + $0x85]]
        %v557 = vstv %s556
        %v558 = vmul.f32 %v557, %v545
        %v559 = vmul.f32 %v557, %v546
        %v560 = vmul.f32 %v557, %v547
        %v561 = vadd.f32 %v524, %v558
        %v562 = vadd.f32 %v525, %v559
        %v563 = vadd.f32 %v526, %v560
        %s564 = sld [smem:[#allocation2 + $0x300]]
        %v565 = vstv %s564
        %v566 = vmul.f32 %v565, %v331
        %v567 = vmul.f32 %v565, %v332
        %v568 = vmul.f32 %v565, %v333
        %s569 = sld [smem:[#allocation2 + $0x301]]
        %v570 = vstv %s569
        %v571 = vmul.f32 %v570, %v335
        %v572 = vmul.f32 %v570, %v336
        %v573 = vmul.f32 %v570, %v337
        %v574 = vadd.f32 %v566, %v571
        %v575 = vadd.f32 %v567, %v572
        %v576 = vadd.f32 %v568, %v573
        %s577 = sld [smem:[#allocation4 + $0x6]]
        %v578 = vstv %s577
        %v579 = vadd.f32 %v574, %v578
        %v580 = vadd.f32 %v575, %v578
        %v581 = vadd.f32 %v576, %v578
        %v582 = vmax.f32 %v579, 0.0
        %v583 = vmax.f32 %v580, 0.0
        %v584 = vmax.f32 %v581, 0.0
        %s585 = sld [smem:[#allocation6 + $0x6]]
        %v586 = vstv %s585
        %v587 = vmul.f32 %v586, %v582
        %v588 = vmul.f32 %v586, %v583
        %v589 = vmul.f32 %v586, %v584
        %v590 = vadd.f32 %v553, %v587
        %v591 = vadd.f32 %v554, %v588
        %v592 = vadd.f32 %v555, %v589
        %s593 = sld [smem:[#allocation6 + $0x86]]
        %v594 = vstv %s593
        %v595 = vmul.f32 %v594, %v582
        %v596 = vmul.f32 %v594, %v583
        %v597 = vmul.f32 %v594, %v584
        %v598 = vadd.f32 %v561, %v595
        %v599 = vadd.f32 %v562, %v596
        %v600 = vadd.f32 %v563, %v597
        %s601 = sld [smem:[#allocation2 + $0x380]]
        %v602 = vstv %s601
        %v603 = vmul.f32 %v602, %v331
        %v604 = vmul.f32 %v602, %v332
        %v605 = vmul.f32 %v602, %v333
        %s606 = sld [smem:[#allocation2 + $0x381]]
        %v607 = vstv %s606
        %v608 = vmul.f32 %v607, %v335
        %v609 = vmul.f32 %v607, %v336
        %v610 = vmul.f32 %v607, %v337
        %v611 = vadd.f32 %v603, %v608
        %v612 = vadd.f32 %v604, %v609
        %v613 = vadd.f32 %v605, %v610
        %s614 = sld [smem:[#allocation4 + $0x7]]
        %v615 = vstv %s614
        %v616 = vadd.f32 %v611, %v615
        %v617 = vadd.f32 %v612, %v615
        %v618 = vadd.f32 %v613, %v615
        %v619 = vmax.f32 %v616, 0.0
        %v620 = vmax.f32 %v617, 0.0
        %v621 = vmax.f32 %v618, 0.0
        %s622 = sld [smem:[#allocation6 + $0x7]]
        %v623 = vstv %s622
        %v624 = vmul.f32 %v623, %v619
        %v625 = vmul.f32 %v623, %v620
        %v626 = vmul.f32 %v623, %v621
        %v627 = vadd.f32 %v590, %v624
        %v628 = vadd.f32 %v591, %v625
        %v629 = vadd.f32 %v592, %v626
        %s630 = sld [smem:[#allocation6 + $0x87]]
        %v631 = vstv %s630
        %v632 = vmul.f32 %v631, %v619
        %v633 = vmul.f32 %v631, %v620
        %v634 = vmul.f32 %v631, %v621
        %v635 = vadd.f32 %v598, %v632
        %v636 = vadd.f32 %v599, %v633
        %v637 = vadd.f32 %v600, %v634
        %s638 = sld [smem:[#allocation2 + $0x400]]
        %v639 = vstv %s638
        %v640 = vmul.f32 %v639, %v331
        %v641 = vmul.f32 %v639, %v332
        %v642 = vmul.f32 %v639, %v333
        %s643 = sld [smem:[#allocation2 + $0x401]]
        %v644 = vstv %s643
        %v645 = vmul.f32 %v644, %v335
        %v646 = vmul.f32 %v644, %v336
        %v647 = vmul.f32 %v644, %v337
        %v648 = vadd.f32 %v640, %v645
        %v649 = vadd.f32 %v641, %v646
        %v650 = vadd.f32 %v642, %v647
        %s651 = sld [smem:[#allocation4 + $0x8]]
        %v652 = vstv %s651
        %v653 = vadd.f32 %v648, %v652
        %v654 = vadd.f32 %v649, %v652
        %v655 = vadd.f32 %v650, %v652
        %v656 = vmax.f32 %v653, 0.0
        %v657 = vmax.f32 %v654, 0.0
        %v658 = vmax.f32 %v655, 0.0
        %s659 = sld [smem:[#allocation6 + $0x8]]
        %v660 = vstv %s659
        %v661 = vmul.f32 %v660, %v656
        %v662 = vmul.f32 %v660, %v657
        %v663 = vmul.f32 %v660, %v658
        %v664 = vadd.f32 %v627, %v661
        %v665 = vadd.f32 %v628, %v662
        %v666 = vadd.f32 %v629, %v663
        %s667 = sld [smem:[#allocation6 + $0x88]]
        %v668 = vstv %s667
        %v669 = vmul.f32 %v668, %v656
        %v670 = vmul.f32 %v668, %v657
        %v671 = vmul.f32 %v668, %v658
        %v672 = vadd.f32 %v635, %v669
        %v673 = vadd.f32 %v636, %v670
        %v674 = vadd.f32 %v637, %v671
        %s675 = sld [smem:[#allocation2 + $0x480]]
        %v676 = vstv %s675
        %v677 = vmul.f32 %v676, %v331
        %v678 = vmul.f32 %v676, %v332
        %v679 = vmul.f32 %v676, %v333
        %s680 = sld [smem:[#allocation2 + $0x481]]
        %v681 = vstv %s680
        %v682 = vmul.f32 %v681, %v335
        %v683 = vmul.f32 %v681, %v336
        %v684 = vmul.f32 %v681, %v337
        %v685 = vadd.f32 %v677, %v682
        %v686 = vadd.f32 %v678, %v683
        %v687 = vadd.f32 %v679, %v684
        %s688 = sld [smem:[#allocation4 + $0x9]]
        %v689 = vstv %s688
        %v690 = vadd.f32 %v685, %v689
        %v691 = vadd.f32 %v686, %v689
        %v692 = vadd.f32 %v687, %v689
        %v693 = vmax.f32 %v690, 0.0
        %v694 = vmax.f32 %v691, 0.0
        %v695 = vmax.f32 %v692, 0.0
        %s696 = sld [smem:[#allocation6 + $0x9]]
        %v697 = vstv %s696
        %v698 = vmul.f32 %v697, %v693
        %v699 = vmul.f32 %v697, %v694
        %v700 = vmul.f32 %v697, %v695
        %v701 = vadd.f32 %v664, %v698
        %v702 = vadd.f32 %v665, %v699
        %v703 = vadd.f32 %v666, %v700
        %s704 = sld [smem:[#allocation6 + $0x89]]
        %v705 = vstv %s704
        %v706 = vmul.f32 %v705, %v693
        %v707 = vmul.f32 %v705, %v694
        %v708 = vmul.f32 %v705, %v695
        %v709 = vadd.f32 %v672, %v706
        %v710 = vadd.f32 %v673, %v707
        %v711 = vadd.f32 %v674, %v708
        %712 = vst [vmem:[%s328] sm:$0xff] %v701
        %713 = vst [vmem:[%s328 + $0x8] sm:$0xff] %v702
        %714 = vst [vmem:[%s328 + $0x10] sm:$0xff] %v703
        %s715 = scalar_lea.vmem %s328, 24 [#allocation10]
        %716 = vst [vmem:[%s715] sm:$0xff] %v709
        %717 = vst [vmem:[%s715 + $0x8] sm:$0xff] %v710
        %718 = vst [vmem:[%s715 + $0x10] sm:$0xff] %v711
        %s719 = sand.u32 %s137, 1
        %s720 = sand.u32 %s137, 1
        %s721 = smul.addr %s720, 48
        %s722 = scalar_lea.vmem [#allocation10], %s721
        // Predicated region
        $region95: #{net2_forward.1} parent=73 // pred_check
          %p723 = pneg %p147
        $region96: #{net2_forward.1} parent=73 // pred_check_branch
          %725 = sbr.rel (%p723) target = $region98
        $region97: #{net2_forward.1} parent=73 // pred_region
          %s726 = smul.u32 3, %s19
          %s727 = smul.addr %s726, 8
          %s728 = scalar_lea.vmem %s5, %s727
          // Predicated region
          $region99: #{net2_forward.1} parent=97 // pred_check
            _
          $region100: #{net2_forward.1} parent=97 // pred_check_branch
            %730 = sbr.rel (0) target = $region102
          $region101: #{net2_forward.1} parent=97 // pred_region
            // Predicated region
            $region103: #{net2_forward.1} parent=101 // pred_check
              _
            $region104: #{net2_forward.1} parent=101 // pred_check_branch
              %732 = sbr.rel (0) target = $region106
            $region105: #{net2_forward.1} parent=101 // pred_region
              // Predicated region
              $region118: #{net2_forward.1} parent=105 // pred_check
                _
              $region119: #{net2_forward.1} parent=105 // pred_check_branch
                %758 = sbr.rel (0) target = $region121
              $region120: #{net2_forward.1} parent=105 // pred_region
                loop: start=0, step=1, limit=1
                $region122: #{net2_forward.1} parent=120 // loop_pre_header
                  _
                $region123: #{net2_forward.1} parent=120 // loop_header
                  %s760 = sphi 0, %s764
                  %p761 = scmp.ge.s32.totalorder %s760, 1
                  %s765 = sphi %s722, %s722
                  %s766 = sphi %s728, %s728
                $region124: #{net2_forward.1} parent=120 // loop_header_branch
                  %763 = sbr.rel (%p761) target = $region128
                $region125: #{net2_forward.1} parent=120 // loop_body
                  %v767 = vld [vmem:[%s765] sm:$0xff]
                  %768 = vst [vmem:[%s766] sm:$0xff] %v767
                  %v769 = vld [vmem:[%s765 + $0x8] sm:$0xff]
                  %770 = vst [vmem:[%s766 + $0x8] sm:$0xff] %v769
                  %v771 = vld [vmem:[%s765 + $0x10] sm:$0xff]
                  %772 = vst [vmem:[%s766 + $0x10] sm:$0xff] %v771
                  %v773 = vld [vmem:[%s765 + $0x18] sm:$0xff]
                  %774 = vst [vmem:[%s766 + $0x30] sm:$0xff] %v773
                  %v775 = vld [vmem:[%s765 + $0x20] sm:$0xff]
                  %776 = vst [vmem:[%s766 + $0x38] sm:$0xff] %v775
                  %v777 = vld [vmem:[%s765 + $0x28] sm:$0xff]
                  %778 = vst [vmem:[%s766 + $0x40] sm:$0xff] %v777
                $region126: #{net2_forward.1} parent=120 // loop_footer
                  %s764 = sadd.s32 1, %s760
                $region127: #{net2_forward.1} parent=120 // loop_footer_branch
                  %759 = sbr.rel target = $region123
                $region128: #{net2_forward.1} parent=120 // loop_exit
                  _
              $region121: #{net2_forward.1} parent=105 // pred_fallthru
                _
              // Predicated region
              $region129: #{net2_forward.1} parent=105 // pred_check
                _
              $region130: #{net2_forward.1} parent=105 // pred_check_branch
                %780 = sbr.rel target = $region132
              $region131: #{net2_forward.1} parent=105 // pred_region
                _
              $region132: #{net2_forward.1} parent=105 // pred_fallthru
                _
            $region106: #{net2_forward.1} parent=101 // pred_fallthru
              _
            // Predicated region
            $region107: #{net2_forward.1} parent=101 // pred_check
              _
            $region108: #{net2_forward.1} parent=101 // pred_check_branch
              %734 = sbr.rel target = $region110
            $region109: #{net2_forward.1} parent=101 // pred_region
              %s736 = ssub.s32 256, 1
              loop: start=0, step=1, limit=1
              $region111: #{net2_forward.1} parent=109 // loop_pre_header
                _
              $region112: #{net2_forward.1} parent=109 // loop_header
                %s738 = sphi 0, %s742
                %p739 = scmp.ge.s32.totalorder %s738, 1
                %s743 = sphi %s722, %s722
                %s744 = sphi %s728, %s728
              $region113: #{net2_forward.1} parent=109 // loop_header_branch
                %741 = sbr.rel (%p739) target = $region117
              $region114: #{net2_forward.1} parent=109 // loop_body
                %v745 = vld [vmem:[%s743] sm:%s736]
                %746 = vst [vmem:[%s744] sm:%s736] %v745
                %v747 = vld [vmem:[%s743 + $0x8] sm:%s736]
                %748 = vst [vmem:[%s744 + $0x8] sm:%s736] %v747
                %v749 = vld [vmem:[%s743 + $0x10] sm:%s736]
                %750 = vst [vmem:[%s744 + $0x10] sm:%s736] %v749
                %v751 = vld [vmem:[%s743 + $0x18] sm:%s736]
                %752 = vst [vmem:[%s744 + $0x30] sm:%s736] %v751
                %v753 = vld [vmem:[%s743 + $0x20] sm:%s736]
                %754 = vst [vmem:[%s744 + $0x38] sm:%s736] %v753
                %v755 = vld [vmem:[%s743 + $0x28] sm:%s736]
                %756 = vst [vmem:[%s744 + $0x40] sm:%s736] %v755
              $region115: #{net2_forward.1} parent=109 // loop_footer
                %s742 = sadd.s32 1, %s738
              $region116: #{net2_forward.1} parent=109 // loop_footer_branch
                %737 = sbr.rel target = $region112
              $region117: #{net2_forward.1} parent=109 // loop_exit
                _
            $region110: #{net2_forward.1} parent=101 // pred_fallthru
              _
          $region102: #{net2_forward.1} parent=97 // pred_fallthru
            _
          %781 = vnop
        $region98: #{net2_forward.1} parent=73 // pred_fallthru
          _
      $region74: #{net2_forward.1} parent=5 // pred_fallthru
        _
      %p782 = scmp.le.s32.totalorder 2, %s14
      // Predicated region
      $region133: #{net2_forward.1} parent=5 // pred_check
        %p783 = pneg %p782
      $region134: #{net2_forward.1} parent=5 // pred_check_branch
        %785 = sbr.rel (%p783) target = $region136
      $region135: #{net2_forward.1} parent=5 // pred_region
        %s786 = ssub.s32 %s14, 2
        // Predicated region
        $region137: #{net2_forward.1} parent=135 // pred_check
          %p787 = pneg %p153
        $region138: #{net2_forward.1} parent=135 // pred_check_branch
          %789 = sbr.rel (%p787) target = $region140
        $region139: #{net2_forward.1} parent=135 // pred_region
          %s790 = sand.u32 %s138, 1
          %s791 = sand.u32 %s138, 1
          %s792 = smul.addr %s791, 48
          %s793 = scalar_lea.vmem [#allocation10], %s792
        $region140: #{net2_forward.1} parent=135 // pred_fallthru
          _
      $region136: #{net2_forward.1} parent=5 // pred_fallthru
        _
    $region6: #{net2_forward.1} parent=1 // loop_footer
      %s18 = sadd.s32 1, %s14
    $region7: #{net2_forward.1} parent=1 // loop_footer_branch
      %13 = sbr.rel target = $region3
    $region8: #{net2_forward.1} parent=1 // loop_exit
      _
    %794 = vsyncpa [#allocation3], 1
    %s795 = scalar_lea.sflag [#allocation3], 1
    %796 = vsyncpa %s795, 1
    %797 = vsyncpa [#allocation5], 1
    %798 = vsyncpa [#allocation8], 1

</llo_original>
